<compile_context>
chip_gen: v7x
topology: tpu7x:2x2x1
jax: 0.10.0
libtpu: 0.0.40
codegen_flags: <defaults>
</compile_context>

<pallas_src>
import functools

import jax
import jax.numpy as jnp
from jax.experimental import pallas as pl
from jax.experimental.pallas import tpu as pltpu


def _custom_sigmoid2_kernel(x_ref, o_ref, *, scale: float):
    # scale = 1 / (128 * abits * wbits), baked in as a Python constant.
    # One fma + min/max on the VPU; the kernel is HBM-bandwidth bound.
    x = x_ref[...]
    y = x.astype(jnp.float32) * scale + 0.5
    o_ref[...] = jnp.clip(y, 0.0, 1.0).astype(o_ref.dtype)


def _round_up(v: int, m: int) -> int:
    return ((v + m - 1) // m) * m


def _sigmoid2_slab(x2d: jax.Array, scale: float, *, donate: bool = False) -> jax.Array:
    """Run the kernel over a lane-dense (rows, lane) slab; lane % 128 == 0."""
    rows, lane = x2d.shape
    itemsize = jnp.dtype(x2d.dtype).itemsize
    # sublane packing granularity: 8 rows for 32-bit, 16 for 16-bit, 32 for 8-bit
    sub = {1: 32, 2: 16}.get(itemsize, 8)

    # ~8 MiB blocks: per-grid-step overhead (~0.35 us) drops to a few percent
    # even at v7x's ~3.2 TB/s HBM.  4 buffers (in+out, double-buffered) = 32 MiB,
    # so raise the scoped-VMEM limit explicitly (48 MiB < 64 MiB v7x physical,
    # well under 128 MiB on v5e/v6e whose scoped defaults of 16/32 MiB would
    # otherwise reject blocks this large).
    target_block_bytes = 8 * 1024 * 1024
    max_tm = max(sub, (target_block_bytes // (lane * itemsize)) // sub * sub)

    min_steps = 4  # >=2 double-buffered steps per TC on v7x (2 TensorCores)
    if rows <= 2 * sub:
        # Tiny tensor: one block equal to the full array (the (8,128) rule is
        # satisfied because block_shape == full array dims).
        tm = rows
    else:
        tm = min(max_tm, _round_up(pl.cdiv(rows, min_steps), sub))
        if tm >= rows:
            tm = rows
        else:
            nsteps = pl.cdiv(rows, tm)
            if nsteps % 2 == 1:
                # Best-effort: prefer an even step count for 2-TC load balance.
                tm_even = max(sub, _round_up(pl.cdiv(rows, nsteps + 1), sub))
                if tm_even < rows and pl.cdiv(rows, tm_even) % 2 == 0:
                    tm = tm_even
    grid = (pl.cdiv(rows, tm),)  # ragged final block is boundary-masked by Pallas

    n = rows * lane
    kernel = functools.partial(_custom_sigmoid2_kernel, scale=scale)
    return pl.pallas_call(
        kernel,
        out_shape=jax.ShapeDtypeStruct((rows, lane), x2d.dtype),
        grid_spec=pltpu.PrefetchScalarGridSpec(
            num_scalar_prefetch=0,
            grid=grid,
            in_specs=[pl.BlockSpec((tm, lane), lambda i: (i, 0))],
            out_specs=pl.BlockSpec((tm, lane), lambda i: (i, 0)),
        ),
        compiler_params=pltpu.CompilerParams(
            dimension_semantics=("parallel",),
            vmem_limit_bytes=48 * 1024 * 1024,
        ),
        cost_estimate=pl.CostEstimate(
            flops=2 * n, transcendentals=0, bytes_accessed=2 * n * itemsize,
        ),
        input_output_aliases=({0: 0} if donate else {}),
    )(x2d)


def custom_sigmoid2(x: jax.Array, abits: int = 4, wbits: int = 4,
                    *, donate_input: bool = False) -> jax.Array:
    """Pallas TPU implementation of CustomSigmoid2.forward (elementwise)."""
    aw = float(abits) * float(wbits)
    if aw == 0.0:
        raise ValueError("abits * wbits must be non-zero")
    scale = 1.0 / (128.0 * aw)

    orig_shape = x.shape
    flat = x.reshape(-1)
    n = flat.shape[0]
    if n == 0:
        return x

    # Widest lane dim that divides n exactly -> lane-dense slab, zero padding.
    lane = 0
    for cand in (1024, 512, 256, 128):
        if n % cand == 0:
            lane = cand
            break

    if lane:
        out2d = _sigmoid2_slab(flat.reshape(n // lane, lane), scale, donate=donate_input)
        return out2d.reshape(orig_shape)

    # Ragged n (not a multiple of 128): run the kernel on the aligned prefix and
    # compute the tiny (<128 element) tail with plain XLA.  This replaces the
    # old jnp.pad + slice-back path which added two full HBM round trips.
    n_main = (n // 128) * 128
    tail = flat[n_main:]
    tail_out = jnp.clip(tail.astype(jnp.float32) * scale + 0.5, 0.0, 1.0).astype(flat.dtype)
    if n_main == 0:
        # Entire tensor is smaller than one vreg row; kernel launch not worth it.
        return tail_out.reshape(orig_shape)
    lane = 128
    for cand in (1024, 512, 256):
        if n_main % cand == 0:
            lane = cand
            break
    main_out = _sigmoid2_slab(flat[:n_main].reshape(n_main // lane, lane), scale)
    return jnp.concatenate([main_out.reshape(-1), tail_out], axis=0).reshape(orig_shape)


def _reference(x, abits=4, wbits=4):
    aw = abits * wbits
    x_abs = jnp.abs(x)
    y = aw / 2 + x_abs / 128.0
    y = jnp.where(x >= 0, y, aw - y)
    y = jnp.clip(y, 0.0, aw)
    return y / aw


if __name__ == "__main__":
    key = jax.random.PRNGKey(0)
    # Small NCHW input consistent with a conv-style activation tensor.
    x = jax.random.normal(key, (2, 4, 16, 16), dtype=jnp.float32) * 50.0

    out = custom_sigmoid2(x, abits=4, wbits=4)
    out = jax.block_until_ready(out)

    ref = _reference(x, 4, 4)
    assert out.shape == x.shape
    assert out.dtype == x.dtype
    assert jnp.allclose(out, ref, atol=1e-6, rtol=1e-6), "mismatch vs reference"

    # Also exercise the ragged (n % 128 != 0) prefix+tail path.
    x2 = jax.random.normal(jax.random.PRNGKey(1), (2, 3, 7, 11), dtype=jnp.float32) * 50.0
    out2 = jax.block_until_ready(custom_sigmoid2(x2, abits=4, wbits=4))
    assert out2.shape == x2.shape
    assert jnp.allclose(out2, _reference(x2, 4, 4), atol=1e-6, rtol=1e-6), "ragged mismatch"

    print("KERNEL_OK")
</pallas_src>

<mosaic_0001>
module attributes {stable_mosaic.version = 11 : i64} {
  func.func @_custom_sigmoid2_kernel(%arg0: i32, %arg1: memref<2x1024xf32, #tpu.memory_space<vmem>>, %arg2: memref<2x1024xf32, #tpu.memory_space<vmem>>) attributes {dimension_semantics = [#tpu.dimension_semantics<parallel>], iteration_bounds = array<i64: 1>, scalar_prefetch = 0 : i64, scratch_operands = 0 : i64, tpu.core_type = #tpu.core_type<tc>, window_params = [{transform_indices = @transform_0, window_bounds = array<i64: 2, 1024>}, {transform_indices = @transform_1, window_bounds = array<i64: 2, 1024>}]} {
    %c0 = arith.constant 0 : index
    %c0_0 = arith.constant 0 : index
    %0 = vector.load %arg1[%c0, %c0_0] : memref<2x1024xf32, #tpu.memory_space<vmem>>, vector<2x1024xf32>
    %cst = arith.constant 4.8828125E-4 : f32
    %1 = vector.broadcast %cst : f32 to vector<2x1024xf32>
    %2 = arith.mulf %0, %1 : vector<2x1024xf32>
    %cst_1 = arith.constant 5.000000e-01 : f32
    %3 = vector.broadcast %cst_1 : f32 to vector<2x1024xf32>
    %4 = arith.addf %2, %3 : vector<2x1024xf32>
    %cst_2 = arith.constant 0.000000e+00 : f32
    %cst_3 = arith.constant 1.000000e+00 : f32
    %5 = vector.broadcast %cst_2 : f32 to vector<2x1024xf32>
    %6 = arith.maximumf %5, %4 : vector<2x1024xf32>
    %7 = vector.broadcast %cst_3 : f32 to vector<2x1024xf32>
    %8 = arith.minimumf %7, %6 : vector<2x1024xf32>
    %c0_4 = arith.constant 0 : index
    %c0_5 = arith.constant 0 : index
    %9 = vector.load %arg2[%c0_4, %c0_5] : memref<2x1024xf32, #tpu.memory_space<vmem>>, vector<2x1024xf32>
    tpu.vector_store %arg2[%c0_4, %c0_5], %8 {strides = array<i32>} : memref<2x1024xf32, #tpu.memory_space<vmem>>, vector<2x1024xf32>,
    return
  }
  func.func @transform_0(%arg0: i32) -> (i32, i32) {
    %c0_i32 = arith.constant 0 : i32
    %c0_i32_0 = arith.constant 0 : i32
    return %arg0, %c0_i32 : i32, i32
  }
  func.func @transform_1(%arg0: i32) -> (i32, i32) {
    %c0_i32 = arith.constant 0 : i32
    %c0_i32_0 = arith.constant 0 : i32
    return %arg0, %c0_i32 : i32, i32
  }
}

</mosaic_0001>

<llo_original>
// kernel: tpu_custom_call.1
$region0: #{tpu_custom_call.1}
  #allocation0 [shape = 'u32[]', space=smem, size = 0x4, offset = 0x4, fixed_abs, tag = 'smem constant byte address 0x4 - core index']
  #allocation1 [shape = 'u32[144,128]{1,0:T(1,128)}', space=vmem, size = 0x12000, scoped, tag = 'internal scratch']
  %s0 = inlined_call_operand.hbm [shape: f32[2,1024], index: 0, kind: input, shape index: {}]
  %s1 = inlined_call_operand.hbm [shape: f32[2,1024], index: 1, kind: output, shape index: {}]
  %s2 = sld [smem:[#allocation0]]
  $region18: #{tpu_custom_call.1} parent=0
    _
  %s4 = ssub.s32 1, %s2
  %s5 = scalar_select 0, %s4, %s2
  $region1: #{tpu_custom_call.1} parent=0
    #allocation2 [shape = 'u8[8192]{0}', space=vmem, size = 0x2000, scoped, tag = 'input window, operand 0, single buffered']
    #allocation3 [shape = 's32[1]{0}', space=sflag, size = 0x4, scoped, tag = 'scoped memory for tpu_custom_call.1']
    #allocation4 [shape = 's32[1]{0}', space=sflag, size = 0x4, scoped, tag = 'scoped memory for tpu_custom_call.1']
    #allocation5 [shape = 'u8[8192]{0}', space=vmem, size = 0x2000, scoped, tag = 'output window, operand 0, single buffered']
    %6 = vsyncpa [#allocation3], 0
    %7 = vsyncpa [#allocation4], 0
    // Predicated region
    $region2: #{tpu_custom_call.1} parent=1 // pred_check
      _
    $region3: #{tpu_custom_call.1} parent=1 // pred_check_branch
      %9 = sbr.rel (0) target = $region5
    $region4: #{tpu_custom_call.1} parent=1 // pred_region
      %s11 = ssub.s32 256, 256
      %12 = vsyncadd [#allocation3], %s11
      %s14 = sshll.u32 [#allocation2], 4
      %s15 = int_to_ptr.vmem [resolvable:$true] %s14
      %17 = dma.hbm_to_vmem [thread:$0]  %s0, 256, %s15, [#allocation3]
    $region5: #{tpu_custom_call.1} parent=1 // pred_fallthru
      _
    // Predicated region
    $region6: #{tpu_custom_call.1} parent=1 // pred_check
      _
    $region7: #{tpu_custom_call.1} parent=1 // pred_check_branch
      %19 = sbr.rel (0) target = $region9
    $region8: #{tpu_custom_call.1} parent=1 // pred_region
      %20 = dma.done [#allocation3], 256
    $region9: #{tpu_custom_call.1} parent=1 // pred_fallthru
      _
    %v21 = vld [vmem:[#allocation2] sm:$0xff]
    %v22 = vld [vmem:[#allocation2 + $0x8] sm:$0xff]
    %v23 = vmul.f32 %v21, 0.00048828125
    %v24 = vmul.f32 %v22, 0.00048828125
    %v25 = vadd.f32 %v23, 0.5
    %v26 = vadd.f32 %v24, 0.5
    %v27 = vmax.f32 %v25, 0.0
    %v28 = vmax.f32 %v26, 0.0
    %v29 = vmin.f32 %v27, 1.0
    %v30 = vmin.f32 %v28, 1.0
    %31 = vst [vmem:[#allocation5] sm:$0xff] %v29
    %32 = vst [vmem:[#allocation5 + $0x8] sm:$0xff] %v30
    // Predicated region
    $region10: #{tpu_custom_call.1} parent=1 // pred_check
      _
    $region11: #{tpu_custom_call.1} parent=1 // pred_check_branch
      %34 = sbr.rel (0) target = $region13
    $region12: #{tpu_custom_call.1} parent=1 // pred_region
      %s36 = ssub.s32 256, 256
      %37 = vsyncadd [#allocation4], %s36
      %s39 = sshll.u32 [#allocation5], 4
      %s40 = int_to_ptr.vmem [resolvable:$true] %s39
      %42 = dma.vmem_to_hbm [thread:$0]  %s40, 256, %s1, [#allocation4]
    $region13: #{tpu_custom_call.1} parent=1 // pred_fallthru
      _
    // Predicated region
    $region14: #{tpu_custom_call.1} parent=1 // pred_check
      _
    $region15: #{tpu_custom_call.1} parent=1 // pred_check_branch
      %44 = sbr.rel (0) target = $region17
    $region16: #{tpu_custom_call.1} parent=1 // pred_region
      %45 = dma.done [#allocation4], 256
    $region17: #{tpu_custom_call.1} parent=1 // pred_fallthru
      _
    %46 = vsyncpa [#allocation3], 1
    %47 = vsyncpa [#allocation4], 1

</llo_original>
